<compile_context>
chip_gen: v7x
topology: tpu7x:2x2x1
jax: 0.10.0
libtpu: 0.0.40
codegen_flags: <defaults>
</compile_context>

<pallas_src>
import functools

import jax
import jax.numpy as jnp
from jax.experimental import pallas as pl
from jax.experimental.pallas import tpu as pltpu

KSIZE = 5
PAD = 2
C_IN = 3
C_IN_PAD = 8        # input channels zero-padded to one sublane tile
C_HID = 16
C_OUT = 3
C_OUT_PAD = 8       # output channels padded to one sublane tile (wrapper keeps [:3])

# Column offsets inside the packed weight operand (C_HID, W_COLS):
#   [ W1 stacked | W2 stacked | Wo | b1 | b2 | bo ]
_OFF_W1 = 0
_OFF_W2 = _OFF_W1 + KSIZE * C_IN_PAD          # 40
_OFF_WO = _OFF_W2 + KSIZE * C_HID             # 120
_OFF_B1 = _OFF_WO + C_HID                     # 136
_OFF_B2 = _OFF_B1 + 1                         # 137
_OFF_BO = _OFF_B2 + 1                         # 138
W_COLS = _OFF_BO + 1                          # 139


def _shift_lanes(a, s):
    """Column r of the result holds a[:, r + s]; zeros are shifted in at the edges."""
    if s == 0:
        return a
    C, N = a.shape
    if s > 0:
        z = jnp.zeros((C, s), a.dtype)
        return jnp.concatenate([a[:, s:], z], axis=1)
    z = jnp.zeros((C, -s), a.dtype)
    return jnp.concatenate([z, a[:, : N + s]], axis=1)


def cnn_kernel(x_ref, w_ref, o_ref, *, T, Tp, Rt):
    # x_ref: (1, C_IN_PAD, Rt_pad)  Bt batch stripes of Tp columns (channels on sublanes)
    # w_ref: (C_HID, W_COLS)        packed weights + biases (fetched once)
    # o_ref: (1, C_OUT_PAD, Rt_pad)
    Rt_pad = x_ref.shape[-1]
    x = x_ref[0]                                   # (8, Rt_pad)
    w = w_ref[...]                                 # (16, W_COLS)

    w1 = w[:, _OFF_W1:_OFF_W2]                     # (16, 40)  tap-stacked conv1
    w2 = w[:, _OFF_W2:_OFF_WO]                     # (16, 80)  tap-stacked conv2
    wo = w[:C_OUT_PAD, _OFF_WO:_OFF_B1]            # (8, 16)   linear head
    b1 = w[:, _OFF_B1:_OFF_B1 + 1]                 # (16, 1)
    b2 = w[:, _OFF_B2:_OFF_B2 + 1]                 # (16, 1)
    bo = w[:C_OUT_PAD, _OFF_BO:_OFF_BO + 1]        # (8, 1)

    # Valid-column mask computed on the VPU (replaces the old mask DMA stream):
    # a column is valid iff it is a real time step of a real stripe (not a
    # per-stripe conv-pad column and not a lane-alignment tail column).
    r = jax.lax.broadcasted_iota(jnp.int32, (1, Rt_pad), 1)
    rs = r % Tp
    valid = ((rs >= PAD) & (rs < PAD + T) & (r < Rt)).astype(jnp.float32)

    def tap_stack(a):
        # im2col along the lane axis: sublane-block k holds a[:, r + k - PAD].
        return jnp.concatenate([_shift_lanes(a, k - PAD) for k in range(KSIZE)],
                               axis=0)

    # conv1 + bias + Swish; zero the stripe-pad / tail columns so conv2 sees the
    # same per-batch zero padding the reference applies.
    a1 = jnp.dot(w1, tap_stack(x), preferred_element_type=jnp.float32) + b1
    h1 = (a1 * jax.nn.sigmoid(a1)) * valid                             # (16, Rt_pad)

    # conv2 + bias + Swish
    a2 = jnp.dot(w2, tap_stack(h1), preferred_element_type=jnp.float32) + b2
    h2 = a2 * jax.nn.sigmoid(a2)                                       # (16, Rt_pad)

    # linear head (lane-dense output, padded out-channels sliced in the wrapper)
    out = jnp.dot(wo, h2, preferred_element_type=jnp.float32) + bo     # (8, Rt_pad)
    o_ref[0] = out.astype(o_ref.dtype)


def _tensorcores_per_chip():
    """Best-effort TensorCores-per-chip query; defaults to 1 (v5e/v6e) when unknown."""
    try:
        d = jax.devices()[0]
        n = getattr(d, "num_cores", None)
        if n:
            return int(n)
        if "v7" in str(getattr(d, "device_kind", "")).lower():
            return 2
    except Exception:
        pass
    return 1


def cnn_forward(t, params, *, max_cols_per_tile=1024):
    """t: (T, B, 3) float32 -> (T, B, 3) float32, matching the PyTorch CNN forward."""
    w1, b1, w2, b2, wo, bo = params
    T, B, _ = t.shape
    Tp = T + 2 * PAD

    # ---- batch tiling: few big lane-dense tiles; only force >=2 grid steps on
    # multi-TensorCore chips (v7x); single-TC v5e/v6e get the minimal grid. ----
    bt_cap = max(1, max_cols_per_tile // Tp)
    min_tiles = 2 if (B > 1 and _tensorcores_per_chip() > 1) else 1
    num_tiles = min(max(pl.cdiv(B, bt_cap), min_tiles), B)
    Bt = pl.cdiv(B, num_tiles)
    num_tiles = pl.cdiv(B, Bt)
    B_pad = num_tiles * Bt
    Rt = Bt * Tp                                   # real columns per tile
    Rt_pad = ((Rt + 127) // 128) * 128             # lane-dense tile width
    # TODO(synk): when B == 1 on a 2-TC chip (v7x) the grid has a single step;
    # splitting along T with a +/-4-row halo would keep both TensorCores busy.

    # ---- input: (T,B,3) -> (num_tiles, C_IN_PAD, Rt_pad), channels on sublanes ----
    xc = jnp.transpose(t, (2, 1, 0))                                        # (3, B, T)
    xc = jnp.pad(xc, ((0, C_IN_PAD - C_IN), (0, B_pad - B), (PAD, PAD)))    # (8, B_pad, Tp)
    xc = xc.reshape(C_IN_PAD, num_tiles, Bt, Tp)
    xc = jnp.transpose(xc, (1, 0, 2, 3)).reshape(num_tiles, C_IN_PAD, Rt)
    x_flat = jnp.pad(xc, ((0, 0), (0, 0), (0, Rt_pad - Rt)))

    # ---- pack all weights + biases into ONE (16, W_COLS) operand ----
    w1p = jnp.pad(w1, ((0, 0), (0, C_IN_PAD - C_IN), (0, 0)))               # (5, 8, 16)
    w1m = jnp.transpose(w1p, (2, 0, 1)).reshape(C_HID, KSIZE * C_IN_PAD)    # (16, 40)
    w2m = jnp.transpose(w2, (2, 0, 1)).reshape(C_HID, KSIZE * C_HID)        # (16, 80)
    wom = jnp.pad(jnp.transpose(wo), ((0, C_HID - C_OUT), (0, 0)))          # (16, 16)
    bom = jnp.pad(jnp.transpose(bo), ((0, C_HID - C_OUT), (0, 0)))          # (16, 1)
    w_all = jnp.concatenate(
        [w1m, w2m, wom, jnp.transpose(b1), jnp.transpose(b2), bom], axis=1)
    assert w_all.shape == (C_HID, W_COLS)

    kernel = functools.partial(cnn_kernel, T=T, Tp=Tp, Rt=Rt)

    out_flat = pl.pallas_call(
        kernel,
        out_shape=jax.ShapeDtypeStruct((num_tiles, C_OUT_PAD, Rt_pad), jnp.float32),
        grid_spec=pltpu.PrefetchScalarGridSpec(
            num_scalar_prefetch=0,
            grid=(num_tiles,),
            in_specs=[
                pl.BlockSpec((1, C_IN_PAD, Rt_pad), lambda i: (i, 0, 0)),
                pl.BlockSpec((C_HID, W_COLS), lambda i: (0, 0)),
            ],
            out_specs=pl.BlockSpec((1, C_OUT_PAD, Rt_pad), lambda i: (i, 0, 0)),
        ),
        compiler_params=pltpu.CompilerParams(
            dimension_semantics=("parallel",),
            vmem_limit_bytes=32 * 1024 * 1024),
    )(x_flat, w_all)

    # ---- strip tiling/padding: (num_tiles, 8, Rt_pad) -> (T, B, 3) ----
    out = out_flat[:, :C_OUT, :Rt].reshape(num_tiles, C_OUT, Bt, Tp)
    out = jnp.transpose(out, (0, 2, 3, 1)).reshape(B_pad, Tp, C_OUT)
    out = out[:B, PAD:PAD + T, :]
    return jnp.transpose(out, (1, 0, 2))


def init_params(key):
    """Deterministic params; PyTorch-style uniform(-1/sqrt(fan_in), 1/sqrt(fan_in))."""
    ks = jax.random.split(key, 6)

    def u(k, shape, fan_in):
        bound = 1.0 / float(fan_in) ** 0.5
        return jax.random.uniform(k, shape, jnp.float32, -bound, bound)

    # Conv1d weights in PyTorch are (out, in, k); rearrange to (k, in, out).
    w1 = jnp.transpose(u(ks[0], (C_HID, C_IN, KSIZE), C_IN * KSIZE), (2, 1, 0))
    b1 = u(ks[1], (1, C_HID), C_IN * KSIZE)
    w2 = jnp.transpose(u(ks[2], (C_HID, C_HID, KSIZE), C_HID * KSIZE), (2, 1, 0))
    b2 = u(ks[3], (1, C_HID), C_HID * KSIZE)
    # Linear weight in PyTorch is (out, in); store transposed (in, out).
    wo = jnp.transpose(u(ks[4], (C_OUT, C_HID), C_HID))
    bo = u(ks[5], (1, C_OUT), C_HID)
    return w1, b1, w2, b2, wo, bo


def reference_forward(t, params):
    """Plain-JAX reference with identical semantics (for correctness check)."""
    w1, b1, w2, b2, wo, bo = params
    T = t.shape[0]
    x = jnp.transpose(t, (1, 0, 2))                            # (B, T, 3)

    def conv(xp, w, b):
        return sum(jnp.einsum('bti,io->bto', xp[:, k:k + T, :], w[k])
                   for k in range(KSIZE)) + b

    h1 = conv(jnp.pad(x, ((0, 0), (PAD, PAD), (0, 0))), w1, b1)
    h1 = h1 * jax.nn.sigmoid(h1)
    h2 = conv(jnp.pad(h1, ((0, 0), (PAD, PAD), (0, 0))), w2, b2)
    h2 = h2 * jax.nn.sigmoid(h2)
    out = h2 @ wo + bo
    return jnp.transpose(out, (1, 0, 2))                       # (T, B, 3)


if __name__ == "__main__":
    key = jax.random.PRNGKey(0)
    pkey, xkey1, xkey2 = jax.random.split(key, 3)
    params = init_params(pkey)

    # small, even case
    T1, B1 = 16, 2
    t1 = jax.random.normal(xkey1, (T1, B1, C_IN), jnp.float32)
    out1 = jax.block_until_ready(cnn_forward(t1, params))
    ref1 = reference_forward(t1, params)
    assert out1.shape == (T1, B1, C_OUT), out1.shape
    assert jnp.allclose(out1, ref1, atol=1e-4, rtol=1e-4), \
        float(jnp.max(jnp.abs(out1 - ref1)))

    # odd batch / longer sequence (exercises batch padding)
    T2, B2 = 33, 3
    t2 = jax.random.normal(xkey2, (T2, B2, C_IN), jnp.float32)
    out2 = jax.block_until_ready(cnn_forward(t2, params))
    ref2 = reference_forward(t2, params)
    assert out2.shape == (T2, B2, C_OUT), out2.shape
    assert jnp.allclose(out2, ref2, atol=1e-4, rtol=1e-4), \
        float(jnp.max(jnp.abs(out2 - ref2)))

    # force a multi-tile grid (exercises the tiled path on any chip)
    out3 = jax.block_until_ready(cnn_forward(t2, params, max_cols_per_tile=40))
    assert jnp.allclose(out3, ref2, atol=1e-4, rtol=1e-4), \
        float(jnp.max(jnp.abs(out3 - ref2)))

    print("KERNEL_OK")
</pallas_src>

<mosaic_0001>
module attributes {stable_mosaic.version = 11 : i64} {
  func.func @cnn_kernel(%arg0: i32, %arg1: memref<1x8x128xf32, #tpu.memory_space<vmem>>, %arg2: memref<16x139xf32, #tpu.memory_space<vmem>>, %arg3: memref<1x8x128xf32, #tpu.memory_space<vmem>>) attributes {dimension_semantics = [#tpu.dimension_semantics<parallel>], iteration_bounds = array<i64: 1>, scalar_prefetch = 0 : i64, scratch_operands = 0 : i64, tpu.core_type = #tpu.core_type<tc>, window_params = [{transform_indices = @transform_0, window_bounds = array<i64: 1, 8, 128>}, {pipeline_mode = #tpu.pipeline_mode<synchronous>, transform_indices = @transform_1, window_bounds = array<i64: 16, 139>}, {transform_indices = @transform_2, window_bounds = array<i64: 1, 8, 128>}]} {
    %c0 = arith.constant 0 : index
    %c0_0 = arith.constant 0 : index
    %c0_1 = arith.constant 0 : index
    %0 = vector.load %arg1[%c0, %c0_0, %c0_1] : memref<1x8x128xf32, #tpu.memory_space<vmem>>, vector<1x8x128xf32>
    %1 = vector.shape_cast %0 : vector<1x8x128xf32> to vector<8x128xf32>
    %c0_2 = arith.constant 0 : index
    %c0_3 = arith.constant 0 : index
    %2 = vector.load %arg2[%c0_2, %c0_3] : memref<16x139xf32, #tpu.memory_space<vmem>>, vector<16x139xf32>
    %3 = vector.extract_strided_slice %2 {offsets = [0, 0], sizes = [16, 40], strides = [1, 1]} : vector<16x139xf32> to vector<16x40xf32>
    %4 = vector.extract_strided_slice %2 {offsets = [0, 40], sizes = [16, 80], strides = [1, 1]} : vector<16x139xf32> to vector<16x80xf32>
    %5 = vector.extract_strided_slice %2 {offsets = [0, 120], sizes = [8, 16], strides = [1, 1]} : vector<16x139xf32> to vector<8x16xf32>
    %6 = vector.extract_strided_slice %2 {offsets = [0, 136], sizes = [16, 1], strides = [1, 1]} : vector<16x139xf32> to vector<16x1xf32>
    %7 = vector.extract_strided_slice %2 {offsets = [0, 137], sizes = [16, 1], strides = [1, 1]} : vector<16x139xf32> to vector<16x1xf32>
    %8 = vector.extract_strided_slice %2 {offsets = [0, 138], sizes = [8, 1], strides = [1, 1]} : vector<16x139xf32> to vector<8x1xf32>
    %9 = tpu.iota {dimensions = array<i32: 1>} : vector<1x128xi32>
    %c20_i32 = arith.constant 20 : i32
    %c0_i32 = arith.constant 0 : i32
    %10 = arith.cmpi eq, %c20_i32, %c0_i32 : i32
    %c1_i32 = arith.constant 1 : i32
    %11 = arith.select %10, %c1_i32, %c20_i32 : i32
    %12 = vector.broadcast %11 : i32 to vector<1x128xi32>
    %13 = arith.remsi %9, %12 : vector<1x128xi32>
    %c0_i32_4 = arith.constant 0 : i32
    %14 = vector.broadcast %c0_i32_4 : i32 to vector<1x128xi32>
    %15 = arith.cmpi ne, %13, %14 : vector<1x128xi32>
    %c0_i32_5 = arith.constant 0 : i32
    %16 = vector.broadcast %c0_i32_5 : i32 to vector<1x128xi32>
    %17 = arith.cmpi slt, %13, %16 : vector<1x128xi32>
    %c0_i32_6 = arith.constant 0 : i32
    %18 = arith.cmpi slt, %11, %c0_i32_6 : i32
    %19 = vector.broadcast %18 : i1 to vector<1x128xi1>
    %20 = vector.broadcast %19 : vector<1x128xi1> to vector<1x128xi1>
    %21 = arith.xori %17, %20 : vector<1x128xi1>
    %22 = arith.andi %21, %15 : vector<1x128xi1>
    %23 = vector.broadcast %11 : i32 to vector<1x128xi32>
    %24 = arith.addi %13, %23 : vector<1x128xi32>
    %25 = arith.select %22, %24, %13 : vector<1x128xi1>, vector<1x128xi32>
    %c2_i32 = arith.constant 2 : i32
    %26 = vector.broadcast %c2_i32 : i32 to vector<1x128xi32>
    %27 = arith.cmpi sge, %25, %26 : vector<1x128xi32>
    %c18_i32 = arith.constant 18 : i32
    %28 = vector.broadcast %c18_i32 : i32 to vector<1x128xi32>
    %29 = arith.cmpi slt, %25, %28 : vector<1x128xi32>
    %30 = arith.andi %27, %29 : vector<1x128xi1>
    %c40_i32 = arith.constant 40 : i32
    %31 = vector.broadcast %c40_i32 : i32 to vector<1x128xi32>
    %32 = arith.cmpi slt, %9, %31 : vector<1x128xi32>
    %33 = arith.andi %30, %32 : vector<1x128xi1>
    %34 = arith.extui %33 : vector<1x128xi1> to vector<1x128xi32>
    %35 = arith.sitofp %34 : vector<1x128xi32> to vector<1x128xf32>
    %cst = arith.constant 0.000000e+00 : f32
    %36 = vector.broadcast %cst : f32 to vector<8x2xf32>
    %37 = vector.extract_strided_slice %1 {offsets = [0, 0], sizes = [8, 126], strides = [1, 1]} : vector<8x128xf32> to vector<8x126xf32>
    %38 = tpu.concatenate %36, %37 in 1 : vector<8x2xf32>, vector<8x126xf32> -> vector<8x128xf32>
    %cst_7 = arith.constant 0.000000e+00 : f32
    %39 = vector.broadcast %cst_7 : f32 to vector<8x1xf32>
    %40 = vector.extract_strided_slice %1 {offsets = [0, 0], sizes = [8, 127], strides = [1, 1]} : vector<8x128xf32> to vector<8x127xf32>
    %41 = tpu.concatenate %39, %40 in 1 : vector<8x1xf32>, vector<8x127xf32> -> vector<8x128xf32>
    %cst_8 = arith.constant 0.000000e+00 : f32
    %42 = vector.broadcast %cst_8 : f32 to vector<8x1xf32>
    %43 = vector.extract_strided_slice %1 {offsets = [0, 1], sizes = [8, 127], strides = [1, 1]} : vector<8x128xf32> to vector<8x127xf32>
    %44 = tpu.concatenate %43, %42 in 1 : vector<8x127xf32>, vector<8x1xf32> -> vector<8x128xf32>
    %cst_9 = arith.constant 0.000000e+00 : f32
    %45 = vector.broadcast %cst_9 : f32 to vector<8x2xf32>
    %46 = vector.extract_strided_slice %1 {offsets = [0, 2], sizes = [8, 126], strides = [1, 1]} : vector<8x128xf32> to vector<8x126xf32>
    %47 = tpu.concatenate %46, %45 in 1 : vector<8x126xf32>, vector<8x2xf32> -> vector<8x128xf32>
    %48 = tpu.concatenate %38, %41, %1, %44, %47 in 0 : vector<8x128xf32>, vector<8x128xf32>, vector<8x128xf32>, vector<8x128xf32>, vector<8x128xf32> -> vector<40x128xf32>
    %cst_10 = arith.constant dense<0.000000e+00> : vector<16x128xf32>
    %49 = tpu.matmul %3, %48, %cst_10 {dimension_numbers = #tpu.dot_dimension_numbers<[1], [0], [0], [1], [0, 0, 1, 1], [], []>} : vector<16x40xf32>, vector<40x128xf32>, vector<16x128xf32> -> vector<16x128xf32>
    %50 = vector.broadcast %6 : vector<16x1xf32> to vector<16x128xf32>
    %51 = arith.addf %49, %50 : vector<16x128xf32>
    %52 = arith.negf %51 : vector<16x128xf32>
    %53 = math.exp %52 : vector<16x128xf32>
    %cst_11 = arith.constant 1.000000e+00 : f32
    %54 = vector.broadcast %cst_11 : f32 to vector<16x128xf32>
    %55 = arith.addf %54, %53 : vector<16x128xf32>
    %56 = arith.divf %54, %55 : vector<16x128xf32>
    %57 = arith.mulf %51, %56 : vector<16x128xf32>
    %58 = vector.broadcast %35 : vector<1x128xf32> to vector<16x128xf32>
    %59 = arith.mulf %57, %58 : vector<16x128xf32>
    %cst_12 = arith.constant 0.000000e+00 : f32
    %60 = vector.broadcast %cst_12 : f32 to vector<16x2xf32>
    %61 = vector.extract_strided_slice %59 {offsets = [0, 0], sizes = [16, 126], strides = [1, 1]} : vector<16x128xf32> to vector<16x126xf32>
    %62 = tpu.concatenate %60, %61 in 1 : vector<16x2xf32>, vector<16x126xf32> -> vector<16x128xf32>
    %cst_13 = arith.constant 0.000000e+00 : f32
    %63 = vector.broadcast %cst_13 : f32 to vector<16x1xf32>
    %64 = vector.extract_strided_slice %59 {offsets = [0, 0], sizes = [16, 127], strides = [1, 1]} : vector<16x128xf32> to vector<16x127xf32>
    %65 = tpu.concatenate %63, %64 in 1 : vector<16x1xf32>, vector<16x127xf32> -> vector<16x128xf32>
    %cst_14 = arith.constant 0.000000e+00 : f32
    %66 = vector.broadcast %cst_14 : f32 to vector<16x1xf32>
    %67 = vector.extract_strided_slice %59 {offsets = [0, 1], sizes = [16, 127], strides = [1, 1]} : vector<16x128xf32> to vector<16x127xf32>
    %68 = tpu.concatenate %67, %66 in 1 : vector<16x127xf32>, vector<16x1xf32> -> vector<16x128xf32>
    %cst_15 = arith.constant 0.000000e+00 : f32
    %69 = vector.broadcast %cst_15 : f32 to vector<16x2xf32>
    %70 = vector.extract_strided_slice %59 {offsets = [0, 2], sizes = [16, 126], strides = [1, 1]} : vector<16x128xf32> to vector<16x126xf32>
    %71 = tpu.concatenate %70, %69 in 1 : vector<16x126xf32>, vector<16x2xf32> -> vector<16x128xf32>
    %72 = tpu.concatenate %62, %65, %59, %68, %71 in 0 : vector<16x128xf32>, vector<16x128xf32>, vector<16x128xf32>, vector<16x128xf32>, vector<16x128xf32> -> vector<80x128xf32>
    %cst_16 = arith.constant dense<0.000000e+00> : vector<16x128xf32>
    %73 = tpu.matmul %4, %72, %cst_16 {dimension_numbers = #tpu.dot_dimension_numbers<[1], [0], [0], [1], [0, 0, 1, 1], [], []>} : vector<16x80xf32>, vector<80x128xf32>, vector<16x128xf32> -> vector<16x128xf32>
    %74 = vector.broadcast %7 : vector<16x1xf32> to vector<16x128xf32>
    %75 = arith.addf %73, %74 : vector<16x128xf32>
    %76 = arith.negf %75 : vector<16x128xf32>
    %77 = math.exp %76 : vector<16x128xf32>
    %cst_17 = arith.constant 1.000000e+00 : f32
    %78 = vector.broadcast %cst_17 : f32 to vector<16x128xf32>
    %79 = arith.addf %78, %77 : vector<16x128xf32>
    %80 = arith.divf %78, %79 : vector<16x128xf32>
    %81 = arith.mulf %75, %80 : vector<16x128xf32>
    %cst_18 = arith.constant dense<0.000000e+00> : vector<8x128xf32>
    %82 = tpu.matmul %5, %81, %cst_18 {dimension_numbers = #tpu.dot_dimension_numbers<[1], [0], [0], [1], [0, 0, 1, 1], [], []>} : vector<8x16xf32>, vector<16x128xf32>, vector<8x128xf32> -> vector<8x128xf32>
    %83 = vector.broadcast %8 : vector<8x1xf32> to vector<8x128xf32>
    %84 = arith.addf %82, %83 : vector<8x128xf32>
    %c0_19 = arith.constant 0 : index
    %c0_20 = arith.constant 0 : index
    %c0_21 = arith.constant 0 : index
    %85 = vector.load %arg3[%c0_19, %c0_20, %c0_21] : memref<1x8x128xf32, #tpu.memory_space<vmem>>, vector<1x8x128xf32>
    %86 = vector.shape_cast %85 : vector<1x8x128xf32> to vector<8x128xf32>
    %87 = vector.shape_cast %84 : vector<8x128xf32> to vector<1x8x128xf32>
    tpu.vector_store %arg3[%c0_19, %c0_20, %c0_21], %87 {strides = array<i32>} : memref<1x8x128xf32, #tpu.memory_space<vmem>>, vector<1x8x128xf32>,
    return
  }
  func.func @transform_0(%arg0: i32) -> (i32, i32, i32) {
    %c0_i32 = arith.constant 0 : i32
    %c0_i32_0 = arith.constant 0 : i32
    %c0_i32_1 = arith.constant 0 : i32
    return %arg0, %c0_i32, %c0_i32_0 : i32, i32, i32
  }
  func.func @transform_1(%arg0: i32) -> (i32, i32) {
    %c0_i32 = arith.constant 0 : i32
    %c0_i32_0 = arith.constant 0 : i32
    %c0_i32_1 = arith.constant 0 : i32
    return %c0_i32, %c0_i32_0 : i32, i32
  }
  func.func @transform_2(%arg0: i32) -> (i32, i32, i32) {
    %c0_i32 = arith.constant 0 : i32
    %c0_i32_0 = arith.constant 0 : i32
    %c0_i32_1 = arith.constant 0 : i32
    return %arg0, %c0_i32, %c0_i32_0 : i32, i32, i32
  }
}

</mosaic_0001>

<llo_original>
// kernel: tpu_custom_call.1
$region0: #{tpu_custom_call.1}
  #allocation0 [shape = 'u32[]', space=smem, size = 0x4, offset = 0x4, fixed_abs, tag = 'smem constant byte address 0x4 - core index']
  #allocation1 [shape = 'u32[144,128]{1,0:T(1,128)}', space=vmem, size = 0x12000, scoped, tag = 'internal scratch']
  %s0 = inlined_call_operand.hbm [shape: f32[1,8,128], index: 0, kind: input, shape index: {}]
  %s1 = inlined_call_operand.hbm [shape: f32[16,139], index: 1, kind: input, shape index: {}]
  %s2 = inlined_call_operand.hbm [shape: f32[1,8,128], index: 2, kind: output, shape index: {}]
  %s3 = sld [smem:[#allocation0]]
  $region26: #{tpu_custom_call.1} parent=0
    _
  %s5 = ssub.s32 1, %s3
  %s6 = scalar_select 0, %s5, %s3
  $region1: #{tpu_custom_call.1} parent=0
    #allocation2 [shape = 'u8[4096]{0}', space=vmem, size = 0x1000, scoped, tag = 'input window, operand 0, single buffered']
    #allocation3 [shape = 's32[1]{0}', space=sflag, size = 0x4, scoped, tag = 'scoped memory for tpu_custom_call.1']
    #allocation4 [shape = 's32[1]{0}', space=sflag, size = 0x4, scoped, tag = 'scoped memory for tpu_custom_call.1']
    #allocation5 [shape = 'u8[16384]{0}', space=vmem, size = 0x4000, scoped, tag = 'input window, operand 1, single buffered']
    #allocation6 [shape = 's32[1]{0}', space=sflag, size = 0x4, scoped, tag = 'scoped memory for tpu_custom_call.1']
    #allocation7 [shape = 'u8[4096]{0}', space=vmem, size = 0x1000, scoped, tag = 'output window, operand 0, single buffered']
    %7 = vsyncpa [#allocation3], 0
    %8 = vsyncpa [#allocation6], 0
    %9 = vsyncpa [#allocation4], 0
    // Predicated region
    $region2: #{tpu_custom_call.1} parent=1 // pred_check
      _
    $region3: #{tpu_custom_call.1} parent=1 // pred_check_branch
      %11 = sbr.rel (0) target = $region5
    $region4: #{tpu_custom_call.1} parent=1 // pred_region
      %s13 = ssub.s32 128, 128
      %14 = vsyncadd [#allocation3], %s13
      %s16 = sshll.u32 [#allocation2], 4
      %s17 = int_to_ptr.vmem [resolvable:$true] %s16
      %19 = dma.hbm_to_vmem [thread:$0]  %s0, 128, %s17, [#allocation3]
    $region5: #{tpu_custom_call.1} parent=1 // pred_fallthru
      _
    // Predicated region
    $region6: #{tpu_custom_call.1} parent=1 // pred_check
      _
    $region7: #{tpu_custom_call.1} parent=1 // pred_check_branch
      %21 = sbr.rel (0) target = $region9
    $region8: #{tpu_custom_call.1} parent=1 // pred_region
      %s23 = ssub.s32 512, 512
      %24 = vsyncadd [#allocation6], %s23
      %s25 = sshll.u32 [#allocation5], 4
      %s26 = int_to_ptr.vmem [resolvable:$true] %s25
      %31 = dma.hbm_to_vmem [thread:$0]  %s1, 512, %s26, [#allocation6], 256, 256, 16
    $region9: #{tpu_custom_call.1} parent=1 // pred_fallthru
      _
    // Predicated region
    $region10: #{tpu_custom_call.1} parent=1 // pred_check
      _
    $region11: #{tpu_custom_call.1} parent=1 // pred_check_branch
      %33 = sbr.rel (0) target = $region13
    $region12: #{tpu_custom_call.1} parent=1 // pred_region
      %34 = dma.done [#allocation3], 128
    $region13: #{tpu_custom_call.1} parent=1 // pred_fallthru
      _
    // Predicated region
    $region14: #{tpu_custom_call.1} parent=1 // pred_check
      _
    $region15: #{tpu_custom_call.1} parent=1 // pred_check_branch
      %36 = sbr.rel (0) target = $region17
    $region16: #{tpu_custom_call.1} parent=1 // pred_region
      %37 = dma.done [#allocation6], 512
    $region17: #{tpu_custom_call.1} parent=1 // pred_fallthru
      _
    %v38 = vld [vmem:[#allocation2] sm:$0xff]
    %v39 = vld [vmem:[#allocation5] sm:$0xff]
    %v40 = vld [vmem:[#allocation5 + $0x8] sm:$0xff]
    %v41 = vld [vmem:[#allocation5 + $0x10] sm:$0xff]
    %v42 = vld [vmem:[#allocation5 + $0x18] sm:$0xff]
    %v43 = vlaneseq
    %v44 = vand.u32 %v43, 127
    %vm45 = vcmp.lt.s32.totalorder %v44, 0
    %v46 = vsub.s32 0, %v44
    %v47 = vsel %vm45, %v46, %v44
    %v48 = vmul.u32.u64.compose %v47, 3435973837
    %v49 = vextract.low.u32 %v48
    %v50 = vextract.high.u32 %v48
    %v51 = vshrl.u32 %v50, 4
    %v52 = vmul.u32 %v51, 20
    %v53 = vsub.s32 %v47, %v52
    %v54 = vsub.s32 0, %v53
    %v55 = vsel %vm45, %v54, %v53
    %vm56 = vcmp.ne.s32.totalorder %v55, 0
    %vm57 = vcmp.lt.s32.totalorder %v55, 0
    %vm58 = vmand %vm57, %vm56
    %v59 = vadd.s32 %v55, 20
    %v60 = vsel %vm58, %v59, %v55
    %vm61 = vcmp.ge.s32.totalorder %v60, 2
    %vm62 = vcmp.lt.s32.totalorder %v60, 18
    %vm63 = vmand %vm61, %vm62
    %vm64 = vcmp.lt.s32.totalorder %v44, 40
    %vm65 = vmand %vm63, %vm64
    %v66 = vsel %vm65, 1, 0
    %v67 = vcvt.s32.f32 %v66
    %69 = vrot.lane.b32.xlu0 %v38, 2
    %v70 = vpop.permute.xlu0 %69
    %vm72 = vcmask 15360
    %v73 = vsel %vm72, 0.0, %v70
    %74 = vrot.lane.b32.xlu0 %v38, 1
    %v75 = vpop.permute.xlu0 %74
    %vm77 = vcmask 7168
    %v78 = vsel %vm77, 0.0, %v75
    %79 = vrot.lane.b32.xlu0 %v38, 127
    %v80 = vpop.permute.xlu0 %79
    %vm82 = vcmask 1039360
    %v83 = vsel %vm82, %v80, 0.0
    %84 = vrot.lane.b32.xlu0 %v38, 126
    %v85 = vpop.permute.xlu0 %84
    %vm87 = vcmask 1031168
    %v88 = vsel %vm87, %v85, 0.0
    %90 = vset.pattern.permute.xlu0 8
    %91 = vperm.xlu0 %90, %v40
    %v92 = vpop.permute.xlu0 %91
    %95 = vset.pattern.permute.xlu0 8
    %96 = vperm.xlu0 %95, %v42
    %v97 = vpop.permute.xlu0 %96
    %vm99 = vcmask 326656
    %v101 = vsel %vm99, %v39, 0
    %v104 = vsel %vm99, %v41, 0
    %106 = vmatprep.subr.mxu0 0.0
    %107 = vmatpush1.msra.mxu0 %v73
    %108 = vmatprep.subr.mxu0 0.0
    %109 = vmatpush1.msra.mxu0 %v78
    %110 = vmatprep.subr.mxu0 0.0
    %111 = vmatpush1.msra.mxu0 %v38
    %112 = vmatprep.subr.mxu0 0.0
    %113 = vmatpush1.msra.mxu0 %v83
    %114 = vmatprep.subr.mxu0 0.0
    %115 = vmatpush1.msra.mxu0 %v88
    %116 = vmatprep.subr.mxu0 0.0
    %117 = vmatpush1.msra.mxu0 0.0
    %118 = vmatprep.subr.mxu0 0.0
    %119 = vmatpush1.msra.mxu0 0.0
    %120 = vmatprep.subr.mxu0 0.0
    %121 = vmatpush1.msra.mxu0 0.0
    %122 = vmatprep.subr.mxu0 0.0
    %123 = vmatpush1.msra.mxu0 0.0
    %124 = vmatprep.subr.mxu0 0.0
    %125 = vmatpush1.msra.mxu0 0.0
    %126 = vmatprep.subr.mxu0 0.0
    %127 = vmatpush1.msra.mxu0 0.0
    %128 = vmatprep.subr.mxu0 0.0
    %129 = vmatpush1.msra.mxu0 0.0
    %130 = vmatprep.subr.mxu0 0.0
    %131 = vmatpush1.msra.mxu0 0.0
    %132 = vmatprep.subr.mxu0 0.0
    %133 = vmatpush1.msra.mxu0 0.0
    %134 = vmatprep.subr.mxu0 0.0
    %135 = vmatpush1.msra.mxu0 0.0
    %136 = vmatprep.subr.mxu0 0.0
    %137 = vmatpush1.msra.mxu0 0.0
    %138 = vmatprep.subr.mxu0 0.0
    %139 = vmatpush1.msra.mxu0 0.0
    %140 = vmatprep.subr.mxu0 0.0
    %141 = vmatpush1.msra.mxu0 0.0
    %142 = vmatprep.subr.mxu0 0.0
    %143 = vmatpush1.msra.mxu0 0.0
    %144 = vmatprep.subr.mxu0 0.0
    %145 = vmatpush1.msra.mxu0 0.0
    %146 = vmatprep.subr.mxu0 0.0
    %147 = vmatpush1.msra.mxu0 0.0
    %148 = vmatprep.subr.mxu0 0.0
    %149 = vmatpush1.msra.mxu0 0.0
    %150 = vmatprep.subr.mxu0 0.0
    %151 = vmatpush1.msra.mxu0 0.0
    %152 = vmatprep.subr.mxu0 0.0
    %153 = vmatpush1.msra.mxu0 0.0
    %154 = vmatprep.subr.mxu0 0.0
    %155 = vmatpush1.msra.mxu0 0.0
    %156 = vmatprep.subr.mxu0 0.0
    %157 = vmatpush1.msra.mxu0 0.0
    %158 = vmatprep.subr.mxu0 0.0
    %159 = vmatpush1.msra.mxu0 0.0
    %160 = vmatprep.subr.mxu0 0.0
    %161 = vmatpush1.msra.mxu0 0.0
    %162 = vmatprep.subr.mxu0 0.0
    %163 = vmatpush1.msra.mxu0 0.0
    %164 = vmatprep.subr.mxu0 0.0
    %165 = vmatpush1.msra.mxu0 0.0
    %166 = vmatprep.subr.mxu0 0.0
    %167 = vmatpush1.msra.mxu0 0.0
    %168 = vmatprep.subr.mxu0 0.0
    %169 = vmatpush1.msra.mxu0 0.0
    %170 = vmatprep.mubr.f32.mxu0 0.0
    %171 = vmatmul.mubr.f32.gmra.mrb[0].mxu0 %v101
    %v172 = vpop.f32.mrb[0].mxu0
    %v173 = vadd.f32 %v92, %v172
    %v174 = vpop.f32.mrb[0].mxu0
    %175 = vmatprep.mubr.f32.mxu0 0.0
    %176 = vmatmul.mubr.f32.gmra.mrb[0].mxu0 %v104
    %v177 = vpop.f32.mrb[0].mxu0
    %v178 = vadd.f32 %v97, %v177
    %v179 = vpop.f32.mrb[0].mxu0
    %180 = vdwg.mxu0
    %v181 = vxor.u32 %v173, 2147483648
    %v182 = vxor.u32 %v178, 2147483648
    %v183 = vmul.f32 %v181, 1.442695
    %v184 = vpow.pop %v183
    %v185 = vmul.f32 %v182, 1.442695
    %v186 = vpow.pop %v185
    %v187 = vadd.f32 %v184, 1.0
    %v188 = vadd.f32 %v186, 1.0
    %v189 = vrcp.pop %v187
    %v190 = vmul.f32 1.0, %v189
    %v191 = vrcp.pop %v188
    %v192 = vmul.f32 1.0, %v191
    %v193 = vmul.f32 %v173, %v190
    %v194 = vmul.f32 %v178, %v192
    %v195 = vmul.f32 %v193, %v67
    %v196 = vmul.f32 %v194, %v67
    %199 = vrot.lane.b32.xlu0 %v195, 2
    %v200 = vpop.permute.xlu0 %199
    %201 = vrot.lane.b32.xlu0 %v196, 2
    %v202 = vpop.permute.xlu0 %201
    %v205 = vsel %vm72, 0.0, %v200
    %v206 = vsel %vm72, 0.0, %v202
    %207 = vrot.lane.b32.xlu0 %v195, 1
    %v208 = vpop.permute.xlu0 %207
    %209 = vrot.lane.b32.xlu0 %v196, 1
    %v210 = vpop.permute.xlu0 %209
    %v213 = vsel %vm77, 0.0, %v208
    %v214 = vsel %vm77, 0.0, %v210
    %215 = vrot.lane.b32.xlu0 %v195, 127
    %v216 = vpop.permute.xlu0 %215
    %217 = vrot.lane.b32.xlu0 %v196, 127
    %v218 = vpop.permute.xlu0 %217
    %v221 = vsel %vm82, %v216, 0.0
    %v222 = vsel %vm82, %v218, 0.0
    %223 = vrot.lane.b32.xlu0 %v195, 126
    %v224 = vpop.permute.xlu0 %223
    %225 = vrot.lane.b32.xlu0 %v196, 126
    %v226 = vpop.permute.xlu0 %225
    %v229 = vsel %vm87, %v224, 0.0
    %v230 = vsel %vm87, %v226, 0.0
    %231 = vset.pattern.permute.xlu0 9
    %232 = vperm.xlu0 %231, %v40
    %v233 = vpop.permute.xlu0 %232
    %235 = vset.pattern.permute.xlu0 9
    %236 = vperm.xlu0 %235, %v42
    %v237 = vpop.permute.xlu0 %236
    %239 = vrot.lane.b32.xlu0 %v39, 88
    %v240 = vpop.permute.xlu0 %239
    %241 = vrot.lane.b32.xlu0 %v41, 88
    %v242 = vpop.permute.xlu0 %241
    %vm243 = vcmask 654336
    %v244 = vsel %vm243, %v240, 0
    %v246 = vsel %vm243, %v242, 0
    %248 = vmatprep.subr.mxu0 0.0
    %249 = vmatpush1.msra.mxu0 %v205
    %250 = vmatprep.subr.mxu0 0.0
    %251 = vmatpush1.msra.mxu0 %v206
    %252 = vmatprep.subr.mxu0 0.0
    %253 = vmatpush1.msra.mxu0 %v213
    %254 = vmatprep.subr.mxu0 0.0
    %255 = vmatpush1.msra.mxu0 %v214
    %256 = vmatprep.subr.mxu0 0.0
    %257 = vmatpush1.msra.mxu0 %v195
    %258 = vmatprep.subr.mxu0 0.0
    %259 = vmatpush1.msra.mxu0 %v196
    %260 = vmatprep.subr.mxu0 0.0
    %261 = vmatpush1.msra.mxu0 %v221
    %262 = vmatprep.subr.mxu0 0.0
    %263 = vmatpush1.msra.mxu0 %v222
    %264 = vmatprep.subr.mxu0 0.0
    %265 = vmatpush1.msra.mxu0 %v229
    %266 = vmatprep.subr.mxu0 0.0
    %267 = vmatpush1.msra.mxu0 %v230
    %268 = vmatprep.subr.mxu0 0.0
    %269 = vmatpush1.msra.mxu0 0.0
    %270 = vmatprep.subr.mxu0 0.0
    %271 = vmatpush1.msra.mxu0 0.0
    %272 = vmatprep.subr.mxu0 0.0
    %273 = vmatpush1.msra.mxu0 0.0
    %274 = vmatprep.subr.mxu0 0.0
    %275 = vmatpush1.msra.mxu0 0.0
    %276 = vmatprep.subr.mxu0 0.0
    %277 = vmatpush1.msra.mxu0 0.0
    %278 = vmatprep.subr.mxu0 0.0
    %279 = vmatpush1.msra.mxu0 0.0
    %280 = vmatprep.subr.mxu0 0.0
    %281 = vmatpush1.msra.mxu0 0.0
    %282 = vmatprep.subr.mxu0 0.0
    %283 = vmatpush1.msra.mxu0 0.0
    %284 = vmatprep.subr.mxu0 0.0
    %285 = vmatpush1.msra.mxu0 0.0
    %286 = vmatprep.subr.mxu0 0.0
    %287 = vmatpush1.msra.mxu0 0.0
    %288 = vmatprep.subr.mxu0 0.0
    %289 = vmatpush1.msra.mxu0 0.0
    %290 = vmatprep.subr.mxu0 0.0
    %291 = vmatpush1.msra.mxu0 0.0
    %292 = vmatprep.subr.mxu0 0.0
    %293 = vmatpush1.msra.mxu0 0.0
    %294 = vmatprep.subr.mxu0 0.0
    %295 = vmatpush1.msra.mxu0 0.0
    %296 = vmatprep.subr.mxu0 0.0
    %297 = vmatpush1.msra.mxu0 0.0
    %298 = vmatprep.subr.mxu0 0.0
    %299 = vmatpush1.msra.mxu0 0.0
    %300 = vmatprep.subr.mxu0 0.0
    %301 = vmatpush1.msra.mxu0 0.0
    %302 = vmatprep.subr.mxu0 0.0
    %303 = vmatpush1.msra.mxu0 0.0
    %304 = vmatprep.subr.mxu0 0.0
    %305 = vmatpush1.msra.mxu0 0.0
    %306 = vmatprep.subr.mxu0 0.0
    %307 = vmatpush1.msra.mxu0 0.0
    %308 = vmatprep.subr.mxu0 0.0
    %309 = vmatpush1.msra.mxu0 0.0
    %310 = vmatprep.subr.mxu0 0.0
    %311 = vmatpush1.msra.mxu0 0.0
    %312 = vmatprep.mubr.f32.mxu0 0.0
    %313 = vmatmul.mubr.f32.gmra.mrb[0].mxu0 %v244
    %v314 = vpop.f32.mrb[0].mxu0
    %v315 = vadd.f32 %v233, %v314
    %v316 = vpop.f32.mrb[0].mxu0
    %317 = vmatprep.mubr.f32.mxu0 0.0
    %318 = vmatmul.mubr.f32.gmra.mrb[0].mxu0 %v246
    %v319 = vpop.f32.mrb[0].mxu0
    %v320 = vadd.f32 %v237, %v319
    %v321 = vpop.f32.mrb[0].mxu0
    %322 = vdwg.mxu0
    %v323 = vxor.u32 %v315, 2147483648
    %v324 = vxor.u32 %v320, 2147483648
    %v325 = vmul.f32 %v323, 1.442695
    %v326 = vpow.pop %v325
    %v327 = vmul.f32 %v324, 1.442695
    %v328 = vpow.pop %v327
    %v329 = vadd.f32 %v326, 1.0
    %v330 = vadd.f32 %v328, 1.0
    %v331 = vrcp.pop %v329
    %v332 = vmul.f32 1.0, %v331
    %v333 = vrcp.pop %v330
    %v334 = vmul.f32 1.0, %v333
    %v335 = vmul.f32 %v315, %v332
    %v336 = vmul.f32 %v320, %v334
    %337 = vset.pattern.permute.xlu0 10
    %338 = vperm.xlu0 %337, %v40
    %v339 = vpop.permute.xlu0 %338
    %341 = vrot.lane.b32.xlu0 %v39, 8
    %v342 = vpop.permute.xlu0 %341
    %343 = vrot.lane.b32.xlu0 %v40, 8
    %v344 = vpop.permute.xlu0 %343
    %vm345 = vcmask 64512
    %v346 = vsel %vm345, %v342, %v344
    %vm347 = vcmask 130048
    %v348 = vsel %vm347, %v346, 0
    %350 = vmatprep.subr.mxu0 0.0
    %351 = vmatpush1.msra.mxu0 %v335
    %352 = vmatprep.subr.mxu0 0.0
    %353 = vmatpush1.msra.mxu0 %v336
    %354 = vmatprep.subr.mxu0 0.0
    %355 = vmatpush1.msra.mxu0 0.0
    %356 = vmatprep.subr.mxu0 0.0
    %357 = vmatpush1.msra.mxu0 0.0
    %358 = vmatprep.subr.mxu0 0.0
    %359 = vmatpush1.msra.mxu0 0.0
    %360 = vmatprep.subr.mxu0 0.0
    %361 = vmatpush1.msra.mxu0 0.0
    %362 = vmatprep.subr.mxu0 0.0
    %363 = vmatpush1.msra.mxu0 0.0
    %364 = vmatprep.subr.mxu0 0.0
    %365 = vmatpush1.msra.mxu0 0.0
    %366 = vmatprep.subr.mxu0 0.0
    %367 = vmatpush1.msra.mxu0 0.0
    %368 = vmatprep.subr.mxu0 0.0
    %369 = vmatpush1.msra.mxu0 0.0
    %370 = vmatprep.subr.mxu0 0.0
    %371 = vmatpush1.msra.mxu0 0.0
    %372 = vmatprep.subr.mxu0 0.0
    %373 = vmatpush1.msra.mxu0 0.0
    %374 = vmatprep.subr.mxu0 0.0
    %375 = vmatpush1.msra.mxu0 0.0
    %376 = vmatprep.subr.mxu0 0.0
    %377 = vmatpush1.msra.mxu0 0.0
    %378 = vmatprep.subr.mxu0 0.0
    %379 = vmatpush1.msra.mxu0 0.0
    %380 = vmatprep.subr.mxu0 0.0
    %381 = vmatpush1.msra.mxu0 0.0
    %382 = vmatprep.subr.mxu0 0.0
    %383 = vmatpush1.msra.mxu0 0.0
    %384 = vmatprep.subr.mxu0 0.0
    %385 = vmatpush1.msra.mxu0 0.0
    %386 = vmatprep.subr.mxu0 0.0
    %387 = vmatpush1.msra.mxu0 0.0
    %388 = vmatprep.subr.mxu0 0.0
    %389 = vmatpush1.msra.mxu0 0.0
    %390 = vmatprep.subr.mxu0 0.0
    %391 = vmatpush1.msra.mxu0 0.0
    %392 = vmatprep.subr.mxu0 0.0
    %393 = vmatpush1.msra.mxu0 0.0
    %394 = vmatprep.subr.mxu0 0.0
    %395 = vmatpush1.msra.mxu0 0.0
    %396 = vmatprep.subr.mxu0 0.0
    %397 = vmatpush1.msra.mxu0 0.0
    %398 = vmatprep.subr.mxu0 0.0
    %399 = vmatpush1.msra.mxu0 0.0
    %400 = vmatprep.subr.mxu0 0.0
    %401 = vmatpush1.msra.mxu0 0.0
    %402 = vmatprep.subr.mxu0 0.0
    %403 = vmatpush1.msra.mxu0 0.0
    %404 = vmatprep.subr.mxu0 0.0
    %405 = vmatpush1.msra.mxu0 0.0
    %406 = vmatprep.subr.mxu0 0.0
    %407 = vmatpush1.msra.mxu0 0.0
    %408 = vmatprep.subr.mxu0 0.0
    %409 = vmatpush1.msra.mxu0 0.0
    %410 = vmatprep.subr.mxu0 0.0
    %411 = vmatpush1.msra.mxu0 0.0
    %412 = vmatprep.subr.mxu0 0.0
    %413 = vmatpush1.msra.mxu0 0.0
    %414 = vmatprep.mubr.f32.mxu0 0.0
    %415 = vmatmul.mubr.f32.gmra.mrb[0].mxu0 %v348
    %v416 = vpop.f32.mrb[0].mxu0
    %v417 = vadd.f32 %v339, %v416
    %v418 = vpop.f32.mrb[0].mxu0
    %419 = vdwg.mxu0
    %420 = vst [vmem:[#allocation7] sm:$0xff] %v417
    // Predicated region
    $region18: #{tpu_custom_call.1} parent=1 // pred_check
      _
    $region19: #{tpu_custom_call.1} parent=1 // pred_check_branch
      %422 = sbr.rel (0) target = $region21
    $region20: #{tpu_custom_call.1} parent=1 // pred_region
      %s424 = ssub.s32 128, 128
      %425 = vsyncadd [#allocation4], %s424
      %s427 = sshll.u32 [#allocation7], 4
      %s428 = int_to_ptr.vmem [resolvable:$true] %s427
      %430 = dma.vmem_to_hbm [thread:$0]  %s428, 128, %s2, [#allocation4]
    $region21: #{tpu_custom_call.1} parent=1 // pred_fallthru
      _
    // Predicated region
    $region22: #{tpu_custom_call.1} parent=1 // pred_check
      _
    $region23: #{tpu_custom_call.1} parent=1 // pred_check_branch
      %432 = sbr.rel (0) target = $region25
    $region24: #{tpu_custom_call.1} parent=1 // pred_region
      %433 = dma.done [#allocation4], 128
    $region25: #{tpu_custom_call.1} parent=1 // pred_fallthru
      _
    %434 = vsyncpa [#allocation3], 1
    %435 = vsyncpa [#allocation6], 1
    %436 = vsyncpa [#allocation4], 1

</llo_original>
